<compile_context>
chip_gen: v5e
topology: v5e:2x2
jax: 0.10.0
libtpu: 0.0.40
codegen_flags: <defaults>
</compile_context>

<pallas_src>
import math
from functools import partial

import jax
import jax.numpy as jnp
from jax.experimental import pallas as pl
from jax.experimental.pallas import tpu as pltpu


def _maxpool_same_kernel(x_ref, o_ref, s_ref, *, kh, kw, sh, sw, top, left):
    """One (n_blk, c_blk) block of planes in NCHW layout.

    x_ref : (NB, CB, H,  W)   input block (VMEM), W on lanes, H on sublanes
    o_ref : (NB, CB, OH, OW)  pooled output block
    s_ref : (NB, CB, WP, OH)  scratch: W-padded, (W, OH)-transposed row maxima
    """
    nb, cb, h, w = x_ref.shape
    _, _, out_h, out_w = o_ref.shape
    wp = s_ref.shape[2]
    dt = x_ref.dtype

    # ---------------- pass 1: pool along H (sublane-strided reads) ----------
    # Output row oh needs padded rows oh*sh + dh, dh = 0..kh-1; padded row p
    # maps to input row p - top; out-of-range rows are zeros (F.pad semantics).
    def h_window(dh):
        start = dh - top                         # input row feeding output row 0
        lo = 0 if start >= 0 else (-start + sh - 1) // sh
        hi = min(out_h - 1, (h - 1 - start) // sh)
        if hi < lo:                              # this tap is padding everywhere
            return jnp.zeros((nb, cb, out_h, w), dt)
        if sh == 1:
            seg = x_ref[:, :, pl.ds(start + lo, hi - lo + 1), :]
        else:
            seg = x_ref[:, :, pl.ds(start + lo * sh, hi - lo + 1, stride=sh), :]
        parts = []
        if lo > 0:                               # top zero-pad rows (<= kh-1)
            parts.append(jnp.zeros((nb, cb, lo, w), dt))
        parts.append(seg)
        if hi < out_h - 1:                       # bottom zero-pad rows (<= kh-1)
            parts.append(jnp.zeros((nb, cb, out_h - 1 - hi, w), dt))
        return parts[0] if len(parts) == 1 else jnp.concatenate(parts, axis=2)

    hm = h_window(0)
    for dh in range(1, kh):
        hm = jnp.maximum(hm, h_window(dh))       # (NB, CB, OH, W)

    # ------- stage: transpose (OH, W) -> (W, OH) into the W-padded scratch --
    # The <= kw-1 pad columns become zero rows of the scratch, so the W pass
    # below never needs masking.  Re-zeroed every step on purpose: with
    # "parallel" grid dims each TensorCore has its own scratch instance, so a
    # first-grid-step-only guard would leave one core's pads uninitialized.
    if left > 0:
        s_ref[:, :, 0:left, :] = jnp.zeros((nb, cb, left, out_h), dt)
    if left + w < wp:
        s_ref[:, :, left + w:wp, :] = jnp.zeros((nb, cb, wp - left - w, out_h), dt)
    s_ref[:, :, left:left + w, :] = jnp.swapaxes(hm, 2, 3)

    # ---------------- pass 2: pool along W (sublane-strided reads) ----------
    def w_window(dw):
        if sw == 1:
            return s_ref[:, :, pl.ds(dw, out_w), :]
        return s_ref[:, :, pl.ds(dw, out_w, stride=sw), :]

    om = w_window(0)
    for dw in range(1, kw):
        om = jnp.maximum(om, w_window(dw))       # (NB, CB, OW, OH)

    o_ref[...] = jnp.swapaxes(om, 2, 3).astype(o_ref.dtype)


def _vmem_capacity_bytes():
    """Physical VMEM of the local chip; conservative (v7x) fallback."""
    try:
        info = pltpu.get_tpu_info()
        for name in ("vmem_capacity_bytes", "vmem_bytes", "vmem_size_bytes"):
            v = getattr(info, name, None)
            if v:
                return int(v)
    except Exception:
        pass
    return 64 * 1024 * 1024


def maxpool2d_same_padding(x, kernel_size=3, stride=2):
    """x: (N, C, H, W) -> (N, C, ceil(H/sh), ceil(W/sw)). Zero 'same' padding,
    exactly matching the PyTorch MaxPool2dSamePadding forward."""
    if isinstance(kernel_size, int):
        kernel_size = (kernel_size, kernel_size)
    if isinstance(stride, int):
        stride = (stride, stride)
    kh, kw = kernel_size
    sh, sw = stride

    n, c, h, w = x.shape
    # Same-padding amounts, exactly as the PyTorch module computes them.
    extra_h = (math.ceil(w / sw) - 1) * sw - w + kw
    extra_v = (math.ceil(h / sh) - 1) * sh - h + kh
    left = extra_h // 2
    right = extra_h - left
    top = extra_v // 2
    bottom = extra_v - top

    # F.pad with negative amounts crops (only possible if kernel < stride).
    if min(top, bottom, left, right) < 0:
        x = x[:, :,
              max(-top, 0): h - max(-bottom, 0),
              max(-left, 0): w - max(-right, 0)]
        n, c, h, w = x.shape
        top, bottom = max(top, 0), max(bottom, 0)
        left, right = max(left, 0), max(right, 0)

    hp = h + top + bottom
    wp = w + left + right
    out_h = (hp - kh) // sh + 1
    out_w = (wp - kw) // sw + 1

    itemsize = jnp.dtype(x.dtype).itemsize
    sub = {4: 8, 2: 16, 1: 32}.get(itemsize, 8)      # sublane multiple per dtype

    def _rup(v, m):
        return -(-v // m) * m

    # Padded VMEM footprint of ONE (n, c) plane: double-buffered input and
    # output blocks plus the single-buffered transpose scratch (lanes round up
    # to 128, sublanes to the dtype multiple).
    plane_bytes = (2 * _rup(h, sub) * _rup(w, 128)
                   + 2 * _rup(out_h, sub) * _rup(out_w, 128)
                   + _rup(wp, sub) * _rup(out_h, 128)) * itemsize

    vmem_cap = _vmem_capacity_bytes()
    budget = max(plane_bytes, int(0.4 * vmem_cap))
    planes = max(1, budget // plane_bytes)
    c_blk = int(min(c, planes))
    n_blk = int(min(n, max(1, planes // c_blk)))

    # v7x has two TensorCores: keep >= 2 parallel grid steps when there is
    # enough work to be worth an extra ~0.35us pipeline step.
    if n_blk >= n and c_blk >= c and n * c >= 2 and n * c * h * w >= (1 << 17):
        if c >= 2:
            c_blk = -(-c // 2)
        else:
            n_blk = -(-n // 2)

    grid = (pl.cdiv(n, n_blk), pl.cdiv(c, c_blk))
    est = plane_bytes * n_blk * c_blk
    vmem_limit = int(min(max(32 << 20, est + (4 << 20)), (vmem_cap * 7) // 8))
    # TODO(synk): tile H into strips with a (kh - sh)-row halo (needs
    # overlapping blocks via pl.Element or manual DMA) for feature maps so
    # large that a single (n, c) plane exceeds the VMEM budget; also pack
    # several rows onto the lane axis when W << 128 to raise lane utilization.

    kernel = partial(_maxpool_same_kernel, kh=kh, kw=kw, sh=sh, sw=sw,
                     top=top, left=left)

    # Note: when n % n_blk or c % c_blk != 0, the trailing block touches
    # out-of-range planes; those lanes produce garbage that is discarded by the
    # masked writeback (channels/images are fully independent here).
    return pl.pallas_call(
        kernel,
        out_shape=jax.ShapeDtypeStruct((n, c, out_h, out_w), x.dtype),
        grid=grid,
        in_specs=[pl.BlockSpec((n_blk, c_blk, h, w),
                               lambda i, j: (i, j, 0, 0))],
        out_specs=pl.BlockSpec((n_blk, c_blk, out_h, out_w),
                               lambda i, j: (i, j, 0, 0)),
        scratch_shapes=[pltpu.VMEM((n_blk, c_blk, wp, out_h), x.dtype)],
        compiler_params=pltpu.CompilerParams(
            dimension_semantics=("parallel", "parallel"),
            vmem_limit_bytes=vmem_limit),
    )(x)


def _reference(x, kernel_size=(3, 3), stride=(2, 2)):
    """Pure-JAX reference matching the PyTorch forward."""
    kh, kw = kernel_size
    sh, sw = stride
    h, w = x.shape[-2:]
    extra_h = (math.ceil(w / sw) - 1) * sw - w + kw
    extra_v = (math.ceil(h / sh) - 1) * sh - h + kh
    left = extra_h // 2
    right = extra_h - left
    top = extra_v // 2
    bottom = extra_v - top
    xp = jnp.pad(x, ((0, 0), (0, 0), (top, bottom), (left, right)),
                 constant_values=0.0)
    return jax.lax.reduce_window(
        xp, -jnp.inf, jax.lax.max,
        window_dimensions=(1, 1, kh, kw),
        window_strides=(1, 1, sh, sw),
        padding="VALID",
    )


if __name__ == "__main__":
    key = jax.random.PRNGKey(0)

    # Primary test: NCHW, small shapes consistent with the module.
    x = jax.random.normal(key, (2, 4, 16, 16), dtype=jnp.float32)
    y = maxpool2d_same_padding(x, kernel_size=3, stride=2)
    y = jax.block_until_ready(y)
    assert y.shape == (2, 4, 8, 8), y.shape
    y_ref = _reference(x, (3, 3), (2, 2))
    assert jnp.array_equal(y, y_ref), "mismatch vs reference (even shape)"

    # Odd spatial shape: exercises top/left zero-padding paths.
    x2 = jax.random.normal(jax.random.PRNGKey(0), (1, 3, 15, 13),
                           dtype=jnp.float32)
    y2 = maxpool2d_same_padding(x2, kernel_size=3, stride=2)
    y2 = jax.block_until_ready(y2)
    assert y2.shape == (1, 3, 8, 7), y2.shape
    y2_ref = _reference(x2, (3, 3), (2, 2))
    assert jnp.array_equal(y2, y2_ref), "mismatch vs reference (odd shape)"

    print("KERNEL_OK")
</pallas_src>

<mosaic_0001>
module attributes {stable_mosaic.version = 11 : i64} {
  func.func @_maxpool_same_kernel(%arg0: i32, %arg1: i32, %arg2: memref<2x4x16x16xf32, #tpu.memory_space<vmem>>, %arg3: memref<2x4x8x8xf32, #tpu.memory_space<vmem>>, %arg4: memref<2x4x17x8xf32, #tpu.memory_space<vmem>>) attributes {dimension_semantics = [#tpu.dimension_semantics<parallel>, #tpu.dimension_semantics<parallel>], iteration_bounds = array<i64: 1, 1>, scalar_prefetch = 0 : i64, scratch_operands = 1 : i64, tpu.core_type = #tpu.core_type<tc>, window_params = [{transform_indices = @transform_0, window_bounds = array<i64: 2, 4, 16, 16>}, {transform_indices = @transform_1, window_bounds = array<i64: 2, 4, 8, 8>}]} {
    %c0 = arith.constant 0 : index
    %c0_0 = arith.constant 0 : index
    %c0_1 = arith.constant 0 : index
    %c0_2 = arith.constant 0 : index
    %0 = tpu.strided_load %arg2[%c0, %c0_0, %c0_1, %c0_2] {strides = array<i32: 1, 1, 2, 1>} : memref<2x4x16x16xf32, #tpu.memory_space<vmem>>, vector<2x4x8x16xf32>
    %c0_3 = arith.constant 0 : index
    %c0_4 = arith.constant 0 : index
    %c1 = arith.constant 1 : index
    %c0_5 = arith.constant 0 : index
    %1 = tpu.strided_load %arg2[%c0_3, %c0_4, %c1, %c0_5] {strides = array<i32: 1, 1, 2, 1>} : memref<2x4x16x16xf32, #tpu.memory_space<vmem>>, vector<2x4x8x16xf32>
    %2 = arith.maximumf %0, %1 : vector<2x4x8x16xf32>
    %c0_6 = arith.constant 0 : index
    %c0_7 = arith.constant 0 : index
    %c2 = arith.constant 2 : index
    %c0_8 = arith.constant 0 : index
    %3 = tpu.strided_load %arg2[%c0_6, %c0_7, %c2, %c0_8] {strides = array<i32: 1, 1, 2, 1>} : memref<2x4x16x16xf32, #tpu.memory_space<vmem>>, vector<2x4x7x16xf32>
    %cst = arith.constant 0.000000e+00 : f32
    %4 = vector.broadcast %cst : f32 to vector<2x4x1x16xf32>
    %5 = tpu.concatenate %3, %4 in 2 : vector<2x4x7x16xf32>, vector<2x4x1x16xf32> -> vector<2x4x8x16xf32>
    %6 = arith.maximumf %2, %5 : vector<2x4x8x16xf32>
    %cst_9 = arith.constant 0.000000e+00 : f32
    %7 = vector.broadcast %cst_9 : f32 to vector<2x4x1x8xf32>
    %c0_10 = arith.constant 0 : index
    %c0_11 = arith.constant 0 : index
    %c16 = arith.constant 16 : index
    %c0_12 = arith.constant 0 : index
    %8 = vector.load %arg4[%c0_10, %c0_11, %c16, %c0_12] : memref<2x4x17x8xf32, #tpu.memory_space<vmem>>, vector<2x4x1x8xf32>
    tpu.vector_store %arg4[%c0_10, %c0_11, %c16, %c0_12], %7 {strides = array<i32>} : memref<2x4x17x8xf32, #tpu.memory_space<vmem>>, vector<2x4x1x8xf32>,
    %9 = tpu.transpose %6, [0, 1, 3, 2] : vector<2x4x8x16xf32> -> vector<2x4x16x8xf32>
    %c0_13 = arith.constant 0 : index
    %c0_14 = arith.constant 0 : index
    %c0_15 = arith.constant 0 : index
    %c0_16 = arith.constant 0 : index
    %10 = vector.load %arg4[%c0_13, %c0_14, %c0_15, %c0_16] : memref<2x4x17x8xf32, #tpu.memory_space<vmem>>, vector<2x4x16x8xf32>
    tpu.vector_store %arg4[%c0_13, %c0_14, %c0_15, %c0_16], %9 {strides = array<i32>} : memref<2x4x17x8xf32, #tpu.memory_space<vmem>>, vector<2x4x16x8xf32>,
    %c0_17 = arith.constant 0 : index
    %c0_18 = arith.constant 0 : index
    %c0_19 = arith.constant 0 : index
    %c0_20 = arith.constant 0 : index
    %11 = tpu.strided_load %arg4[%c0_17, %c0_18, %c0_19, %c0_20] {strides = array<i32: 1, 1, 2, 1>} : memref<2x4x17x8xf32, #tpu.memory_space<vmem>>, vector<2x4x8x8xf32>
    %c0_21 = arith.constant 0 : index
    %c0_22 = arith.constant 0 : index
    %c1_23 = arith.constant 1 : index
    %c0_24 = arith.constant 0 : index
    %12 = tpu.strided_load %arg4[%c0_21, %c0_22, %c1_23, %c0_24] {strides = array<i32: 1, 1, 2, 1>} : memref<2x4x17x8xf32, #tpu.memory_space<vmem>>, vector<2x4x8x8xf32>
    %13 = arith.maximumf %11, %12 : vector<2x4x8x8xf32>
    %c0_25 = arith.constant 0 : index
    %c0_26 = arith.constant 0 : index
    %c2_27 = arith.constant 2 : index
    %c0_28 = arith.constant 0 : index
    %14 = tpu.strided_load %arg4[%c0_25, %c0_26, %c2_27, %c0_28] {strides = array<i32: 1, 1, 2, 1>} : memref<2x4x17x8xf32, #tpu.memory_space<vmem>>, vector<2x4x8x8xf32>
    %15 = arith.maximumf %13, %14 : vector<2x4x8x8xf32>
    %16 = tpu.transpose %15, [0, 1, 3, 2] : vector<2x4x8x8xf32> -> vector<2x4x8x8xf32>
    %c0_29 = arith.constant 0 : index
    %c0_30 = arith.constant 0 : index
    %c0_31 = arith.constant 0 : index
    %c0_32 = arith.constant 0 : index
    %17 = vector.load %arg3[%c0_29, %c0_30, %c0_31, %c0_32] : memref<2x4x8x8xf32, #tpu.memory_space<vmem>>, vector<2x4x8x8xf32>
    tpu.vector_store %arg3[%c0_29, %c0_30, %c0_31, %c0_32], %16 {strides = array<i32>} : memref<2x4x8x8xf32, #tpu.memory_space<vmem>>, vector<2x4x8x8xf32>,
    return
  }
  func.func @transform_0(%arg0: i32, %arg1: i32) -> (i32, i32, i32, i32) {
    %c0_i32 = arith.constant 0 : i32
    %c0_i32_0 = arith.constant 0 : i32
    %c0_i32_1 = arith.constant 0 : i32
    return %arg0, %arg1, %c0_i32, %c0_i32_0 : i32, i32, i32, i32
  }
  func.func @transform_1(%arg0: i32, %arg1: i32) -> (i32, i32, i32, i32) {
    %c0_i32 = arith.constant 0 : i32
    %c0_i32_0 = arith.constant 0 : i32
    %c0_i32_1 = arith.constant 0 : i32
    return %arg0, %arg1, %c0_i32, %c0_i32_0 : i32, i32, i32, i32
  }
}

</mosaic_0001>

<llo_original>
// kernel: tpu_custom_call.1
$region0: #{tpu_custom_call.1}
  #allocation0 [shape = 'u32[]', space=smem, size = 0x4, offset = 0x4, fixed_abs, tag = 'smem constant byte address 0x4 - core index']
  #allocation1 [shape = 'u32[72,128]{1,0:T(1,128)}', space=vmem, size = 0x9000, scoped, tag = 'internal scratch']
  #allocation2 [shape = 'f32[2,4,17,8]{3,2,1,0:T(8,128)}', space=vmem, size = 0x18000, scoped, tag = 'scratch operand']
  %s0 = inlined_call_operand.hbm [shape: f32[2,4,16,16], index: 0, kind: input, shape index: {}]
  %s1 = inlined_call_operand.hbm [shape: f32[2,4,8,8], index: 1, kind: output, shape index: {}]
  %s2 = sld [smem:[#allocation0]]
  $region18: #{tpu_custom_call.1} parent=0
    _
  %s4 = ssub.s32 1, %s2
  %s5 = scalar_select 0, %s4, %s2
  $region1: #{tpu_custom_call.1} parent=0
    #allocation3 [shape = 'u8[65536]{0}', space=vmem, size = 0x10000, scoped, tag = 'input window, operand 0, single buffered']
    #allocation4 [shape = 's32[1]{0}', space=sflag, size = 0x4, scoped, tag = 'scoped memory for tpu_custom_call.1']
    #allocation5 [shape = 's32[1]{0}', space=sflag, size = 0x4, scoped, tag = 'scoped memory for tpu_custom_call.1']
    #allocation6 [shape = 'u8[32768]{0}', space=vmem, size = 0x8000, scoped, tag = 'output window, operand 0, single buffered']
    %6 = vsyncpa [#allocation4], 0
    %7 = vsyncpa [#allocation5], 0
    // Predicated region
    $region2: #{tpu_custom_call.1} parent=1 // pred_check
      _
    $region3: #{tpu_custom_call.1} parent=1 // pred_check_branch
      %9 = sbr.rel (0) target = $region5
    $region4: #{tpu_custom_call.1} parent=1 // pred_region
      %11 = vsyncadd [#allocation4], 0
      %s12 = sshll.u32 %s0, 4
      %s13 = int_to_ptr.hbm [resolvable:$true] %s12
      %s14 = sshll.u32 [#allocation3], 4
      %s15 = int_to_ptr.vmem [resolvable:$true] %s14
      %20 = dma.hbm_to_vmem [thread:$0]  %s13, 2048, %s15, [#allocation4], 128, 128, 8
    $region5: #{tpu_custom_call.1} parent=1 // pred_fallthru
      _
    // Predicated region
    $region6: #{tpu_custom_call.1} parent=1 // pred_check
      _
    $region7: #{tpu_custom_call.1} parent=1 // pred_check_branch
      %22 = sbr.rel (0) target = $region9
    $region8: #{tpu_custom_call.1} parent=1 // pred_region
      %24 = dma.done [#allocation4], 2048
    $region9: #{tpu_custom_call.1} parent=1 // pred_fallthru
      _
    %v25 = vld [vmem:[#allocation3] ss:$2 sm:$0xff]
    %s26 = scalar_lea.vmem [#allocation3], 16
    %v27 = vld [vmem:[%s26] ss:$2 sm:$0xff]
    %s28 = scalar_lea.vmem [#allocation3], 32
    %v29 = vld [vmem:[%s28] ss:$2 sm:$0xff]
    %s30 = scalar_lea.vmem [#allocation3], 48
    %v31 = vld [vmem:[%s30] ss:$2 sm:$0xff]
    %s32 = scalar_lea.vmem [#allocation3], 64
    %v33 = vld [vmem:[%s32] ss:$2 sm:$0xff]
    %s34 = scalar_lea.vmem [#allocation3], 80
    %v35 = vld [vmem:[%s34] ss:$2 sm:$0xff]
    %s36 = scalar_lea.vmem [#allocation3], 96
    %v37 = vld [vmem:[%s36] ss:$2 sm:$0xff]
    %s38 = scalar_lea.vmem [#allocation3], 112
    %v39 = vld [vmem:[%s38] ss:$2 sm:$0xff]
    %s40 = scalar_lea.vmem [#allocation3], 1
    %v41 = vld [vmem:[%s40] ss:$2 sm:$0xff]
    %s42 = scalar_lea.vmem [#allocation3], 17
    %v43 = vld [vmem:[%s42] ss:$2 sm:$0xff]
    %s44 = scalar_lea.vmem [#allocation3], 33
    %v45 = vld [vmem:[%s44] ss:$2 sm:$0xff]
    %s46 = scalar_lea.vmem [#allocation3], 49
    %v47 = vld [vmem:[%s46] ss:$2 sm:$0xff]
    %s48 = scalar_lea.vmem [#allocation3], 65
    %v49 = vld [vmem:[%s48] ss:$2 sm:$0xff]
    %s50 = scalar_lea.vmem [#allocation3], 81
    %v51 = vld [vmem:[%s50] ss:$2 sm:$0xff]
    %s52 = scalar_lea.vmem [#allocation3], 97
    %v53 = vld [vmem:[%s52] ss:$2 sm:$0xff]
    %s54 = scalar_lea.vmem [#allocation3], 113
    %v55 = vld [vmem:[%s54] ss:$2 sm:$0xff]
    %v56 = vmax.f32 %v25, %v41
    %v57 = vmax.f32 %v27, %v43
    %v58 = vmax.f32 %v29, %v45
    %v59 = vmax.f32 %v31, %v47
    %v60 = vmax.f32 %v33, %v49
    %v61 = vmax.f32 %v35, %v51
    %v62 = vmax.f32 %v37, %v53
    %v63 = vmax.f32 %v39, %v55
    %s64 = scalar_lea.vmem [#allocation3], 2
    %v65 = vld [vmem:[%s64] ss:$2 sm:$0x7f]
    %s66 = scalar_lea.vmem [#allocation3], 18
    %v67 = vld [vmem:[%s66] ss:$2 sm:$0x7f]
    %s68 = scalar_lea.vmem [#allocation3], 34
    %v69 = vld [vmem:[%s68] ss:$2 sm:$0x7f]
    %s70 = scalar_lea.vmem [#allocation3], 50
    %v71 = vld [vmem:[%s70] ss:$2 sm:$0x7f]
    %s72 = scalar_lea.vmem [#allocation3], 66
    %v73 = vld [vmem:[%s72] ss:$2 sm:$0x7f]
    %s74 = scalar_lea.vmem [#allocation3], 82
    %v75 = vld [vmem:[%s74] ss:$2 sm:$0x7f]
    %s76 = scalar_lea.vmem [#allocation3], 98
    %v77 = vld [vmem:[%s76] ss:$2 sm:$0x7f]
    %s78 = scalar_lea.vmem [#allocation3], 114
    %v79 = vld [vmem:[%s78] ss:$2 sm:$0x7f]
    %vm80 = vcmask 1046528
    %v81 = vsel %vm80, %v65, 0.0
    %v82 = vsel %vm80, %v67, 0.0
    %v83 = vsel %vm80, %v69, 0.0
    %v84 = vsel %vm80, %v71, 0.0
    %v85 = vsel %vm80, %v73, 0.0
    %v86 = vsel %vm80, %v75, 0.0
    %v87 = vsel %vm80, %v77, 0.0
    %v88 = vsel %vm80, %v79, 0.0
    %v89 = vmax.f32 %v56, %v81
    %v90 = vmax.f32 %v57, %v82
    %v91 = vmax.f32 %v58, %v83
    %v92 = vmax.f32 %v59, %v84
    %v93 = vmax.f32 %v60, %v85
    %v94 = vmax.f32 %v61, %v86
    %v95 = vmax.f32 %v62, %v87
    %v96 = vmax.f32 %v63, %v88
    %vm97 = vcmask 57344
    %98 = vst.msk [vmem:[#allocation2 + $0x10] sm:$0x1] %vm97, 0.0
    %99 = vst.msk [vmem:[#allocation2 + $0x28] sm:$0x1] %vm97, 0.0
    %100 = vst.msk [vmem:[#allocation2 + $0x40] sm:$0x1] %vm97, 0.0
    %101 = vst.msk [vmem:[#allocation2 + $0x58] sm:$0x1] %vm97, 0.0
    %102 = vst.msk [vmem:[#allocation2 + $0x70] sm:$0x1] %vm97, 0.0
    %103 = vst.msk [vmem:[#allocation2 + $0x88] sm:$0x1] %vm97, 0.0
    %104 = vst.msk [vmem:[#allocation2 + $0xa0] sm:$0x1] %vm97, 0.0
    %105 = vst.msk [vmem:[#allocation2 + $0xb8] sm:$0x1] %vm97, 0.0
    %106 = vxpose.xlu0.b32.start [1/16] %v89, 128
    %107 = vxpose.xlu0.b32.cont [2/16] 0.0, 128
    %108 = vxpose.xlu0.b32.cont [3/16] 0.0, 128
    %109 = vxpose.xlu0.b32.cont [4/16] 0.0, 128
    %110 = vxpose.xlu0.b32.cont [5/16] 0.0, 128
    %111 = vxpose.xlu0.b32.cont [6/16] 0.0, 128
    %112 = vxpose.xlu0.b32.cont [7/16] 0.0, 128
    %113 = vxpose.xlu0.b32.cont [8/16] 0.0, 128
    %114 = vxpose.xlu0.b32.cont [9/16] 0.0, 128
    %115 = vxpose.xlu0.b32.cont [10/16] 0.0, 128
    %116 = vxpose.xlu0.b32.cont [11/16] 0.0, 128
    %117 = vxpose.xlu0.b32.cont [12/16] 0.0, 128
    %118 = vxpose.xlu0.b32.cont [13/16] 0.0, 128
    %119 = vxpose.xlu0.b32.cont [14/16] 0.0, 128
    %120 = vxpose.xlu0.b32.cont [15/16] 0.0, 128
    %121 = vxpose.xlu0.b32.end [16/16] 0.0, 128
    %v122 = vpop.trf.xlu0
    %v123 = vpop.trf.xlu0
    %v124 = vpop.trf.xlu0
    %v125 = vpop.trf.xlu0
    %v126 = vpop.trf.xlu0
    %v127 = vpop.trf.xlu0
    %v128 = vpop.trf.xlu0
    %v129 = vpop.trf.xlu0
    %v130 = vpop.trf.xlu0
    %v131 = vpop.trf.xlu0
    %v132 = vpop.trf.xlu0
    %v133 = vpop.trf.xlu0
    %v134 = vpop.trf.xlu0
    %v135 = vpop.trf.xlu0
    %v136 = vpop.trf.xlu0
    %v137 = vpop.trf.xlu0
    %138 = vxpose.xlu0.b32.start [1/16] %v90, 128
    %139 = vxpose.xlu0.b32.cont [2/16] 0.0, 128
    %140 = vxpose.xlu0.b32.cont [3/16] 0.0, 128
    %141 = vxpose.xlu0.b32.cont [4/16] 0.0, 128
    %142 = vxpose.xlu0.b32.cont [5/16] 0.0, 128
    %143 = vxpose.xlu0.b32.cont [6/16] 0.0, 128
    %144 = vxpose.xlu0.b32.cont [7/16] 0.0, 128
    %145 = vxpose.xlu0.b32.cont [8/16] 0.0, 128
    %146 = vxpose.xlu0.b32.cont [9/16] 0.0, 128
    %147 = vxpose.xlu0.b32.cont [10/16] 0.0, 128
    %148 = vxpose.xlu0.b32.cont [11/16] 0.0, 128
    %149 = vxpose.xlu0.b32.cont [12/16] 0.0, 128
    %150 = vxpose.xlu0.b32.cont [13/16] 0.0, 128
    %151 = vxpose.xlu0.b32.cont [14/16] 0.0, 128
    %152 = vxpose.xlu0.b32.cont [15/16] 0.0, 128
    %153 = vxpose.xlu0.b32.end [16/16] 0.0, 128
    %v154 = vpop.trf.xlu0
    %v155 = vpop.trf.xlu0
    %v156 = vpop.trf.xlu0
    %v157 = vpop.trf.xlu0
    %v158 = vpop.trf.xlu0
    %v159 = vpop.trf.xlu0
    %v160 = vpop.trf.xlu0
    %v161 = vpop.trf.xlu0
    %v162 = vpop.trf.xlu0
    %v163 = vpop.trf.xlu0
    %v164 = vpop.trf.xlu0
    %v165 = vpop.trf.xlu0
    %v166 = vpop.trf.xlu0
    %v167 = vpop.trf.xlu0
    %v168 = vpop.trf.xlu0
    %v169 = vpop.trf.xlu0
    %170 = vxpose.xlu0.b32.start [1/16] %v91, 128
    %171 = vxpose.xlu0.b32.cont [2/16] 0.0, 128
    %172 = vxpose.xlu0.b32.cont [3/16] 0.0, 128
    %173 = vxpose.xlu0.b32.cont [4/16] 0.0, 128
    %174 = vxpose.xlu0.b32.cont [5/16] 0.0, 128
    %175 = vxpose.xlu0.b32.cont [6/16] 0.0, 128
    %176 = vxpose.xlu0.b32.cont [7/16] 0.0, 128
    %177 = vxpose.xlu0.b32.cont [8/16] 0.0, 128
    %178 = vxpose.xlu0.b32.cont [9/16] 0.0, 128
    %179 = vxpose.xlu0.b32.cont [10/16] 0.0, 128
    %180 = vxpose.xlu0.b32.cont [11/16] 0.0, 128
    %181 = vxpose.xlu0.b32.cont [12/16] 0.0, 128
    %182 = vxpose.xlu0.b32.cont [13/16] 0.0, 128
    %183 = vxpose.xlu0.b32.cont [14/16] 0.0, 128
    %184 = vxpose.xlu0.b32.cont [15/16] 0.0, 128
    %185 = vxpose.xlu0.b32.end [16/16] 0.0, 128
    %v186 = vpop.trf.xlu0
    %v187 = vpop.trf.xlu0
    %v188 = vpop.trf.xlu0
    %v189 = vpop.trf.xlu0
    %v190 = vpop.trf.xlu0
    %v191 = vpop.trf.xlu0
    %v192 = vpop.trf.xlu0
    %v193 = vpop.trf.xlu0
    %v194 = vpop.trf.xlu0
    %v195 = vpop.trf.xlu0
    %v196 = vpop.trf.xlu0
    %v197 = vpop.trf.xlu0
    %v198 = vpop.trf.xlu0
    %v199 = vpop.trf.xlu0
    %v200 = vpop.trf.xlu0
    %v201 = vpop.trf.xlu0
    %202 = vxpose.xlu0.b32.start [1/16] %v92, 128
    %203 = vxpose.xlu0.b32.cont [2/16] 0.0, 128
    %204 = vxpose.xlu0.b32.cont [3/16] 0.0, 128
    %205 = vxpose.xlu0.b32.cont [4/16] 0.0, 128
    %206 = vxpose.xlu0.b32.cont [5/16] 0.0, 128
    %207 = vxpose.xlu0.b32.cont [6/16] 0.0, 128
    %208 = vxpose.xlu0.b32.cont [7/16] 0.0, 128
    %209 = vxpose.xlu0.b32.cont [8/16] 0.0, 128
    %210 = vxpose.xlu0.b32.cont [9/16] 0.0, 128
    %211 = vxpose.xlu0.b32.cont [10/16] 0.0, 128
    %212 = vxpose.xlu0.b32.cont [11/16] 0.0, 128
    %213 = vxpose.xlu0.b32.cont [12/16] 0.0, 128
    %214 = vxpose.xlu0.b32.cont [13/16] 0.0, 128
    %215 = vxpose.xlu0.b32.cont [14/16] 0.0, 128
    %216 = vxpose.xlu0.b32.cont [15/16] 0.0, 128
    %217 = vxpose.xlu0.b32.end [16/16] 0.0, 128
    %v218 = vpop.trf.xlu0
    %v219 = vpop.trf.xlu0
    %v220 = vpop.trf.xlu0
    %v221 = vpop.trf.xlu0
    %v222 = vpop.trf.xlu0
    %v223 = vpop.trf.xlu0
    %v224 = vpop.trf.xlu0
    %v225 = vpop.trf.xlu0
    %v226 = vpop.trf.xlu0
    %v227 = vpop.trf.xlu0
    %v228 = vpop.trf.xlu0
    %v229 = vpop.trf.xlu0
    %v230 = vpop.trf.xlu0
    %v231 = vpop.trf.xlu0
    %v232 = vpop.trf.xlu0
    %v233 = vpop.trf.xlu0
    %234 = vxpose.xlu0.b32.start [1/16] %v93, 128
    %235 = vxpose.xlu0.b32.cont [2/16] 0.0, 128
    %236 = vxpose.xlu0.b32.cont [3/16] 0.0, 128
    %237 = vxpose.xlu0.b32.cont [4/16] 0.0, 128
    %238 = vxpose.xlu0.b32.cont [5/16] 0.0, 128
    %239 = vxpose.xlu0.b32.cont [6/16] 0.0, 128
    %240 = vxpose.xlu0.b32.cont [7/16] 0.0, 128
    %241 = vxpose.xlu0.b32.cont [8/16] 0.0, 128
    %242 = vxpose.xlu0.b32.cont [9/16] 0.0, 128
    %243 = vxpose.xlu0.b32.cont [10/16] 0.0, 128
    %244 = vxpose.xlu0.b32.cont [11/16] 0.0, 128
    %245 = vxpose.xlu0.b32.cont [12/16] 0.0, 128
    %246 = vxpose.xlu0.b32.cont [13/16] 0.0, 128
    %247 = vxpose.xlu0.b32.cont [14/16] 0.0, 128
    %248 = vxpose.xlu0.b32.cont [15/16] 0.0, 128
    %249 = vxpose.xlu0.b32.end [16/16] 0.0, 128
    %v250 = vpop.trf.xlu0
    %v251 = vpop.trf.xlu0
    %v252 = vpop.trf.xlu0
    %v253 = vpop.trf.xlu0
    %v254 = vpop.trf.xlu0
    %v255 = vpop.trf.xlu0
    %v256 = vpop.trf.xlu0
    %v257 = vpop.trf.xlu0
    %v258 = vpop.trf.xlu0
    %v259 = vpop.trf.xlu0
    %v260 = vpop.trf.xlu0
    %v261 = vpop.trf.xlu0
    %v262 = vpop.trf.xlu0
    %v263 = vpop.trf.xlu0
    %v264 = vpop.trf.xlu0
    %v265 = vpop.trf.xlu0
    %266 = vxpose.xlu0.b32.start [1/16] %v94, 128
    %267 = vxpose.xlu0.b32.cont [2/16] 0.0, 128
    %268 = vxpose.xlu0.b32.cont [3/16] 0.0, 128
    %269 = vxpose.xlu0.b32.cont [4/16] 0.0, 128
    %270 = vxpose.xlu0.b32.cont [5/16] 0.0, 128
    %271 = vxpose.xlu0.b32.cont [6/16] 0.0, 128
    %272 = vxpose.xlu0.b32.cont [7/16] 0.0, 128
    %273 = vxpose.xlu0.b32.cont [8/16] 0.0, 128
    %274 = vxpose.xlu0.b32.cont [9/16] 0.0, 128
    %275 = vxpose.xlu0.b32.cont [10/16] 0.0, 128
    %276 = vxpose.xlu0.b32.cont [11/16] 0.0, 128
    %277 = vxpose.xlu0.b32.cont [12/16] 0.0, 128
    %278 = vxpose.xlu0.b32.cont [13/16] 0.0, 128
    %279 = vxpose.xlu0.b32.cont [14/16] 0.0, 128
    %280 = vxpose.xlu0.b32.cont [15/16] 0.0, 128
    %281 = vxpose.xlu0.b32.end [16/16] 0.0, 128
    %v282 = vpop.trf.xlu0
    %v283 = vpop.trf.xlu0
    %v284 = vpop.trf.xlu0
    %v285 = vpop.trf.xlu0
    %v286 = vpop.trf.xlu0
    %v287 = vpop.trf.xlu0
    %v288 = vpop.trf.xlu0
    %v289 = vpop.trf.xlu0
    %v290 = vpop.trf.xlu0
    %v291 = vpop.trf.xlu0
    %v292 = vpop.trf.xlu0
    %v293 = vpop.trf.xlu0
    %v294 = vpop.trf.xlu0
    %v295 = vpop.trf.xlu0
    %v296 = vpop.trf.xlu0
    %v297 = vpop.trf.xlu0
    %298 = vxpose.xlu0.b32.start [1/16] %v95, 128
    %299 = vxpose.xlu0.b32.cont [2/16] 0.0, 128
    %300 = vxpose.xlu0.b32.cont [3/16] 0.0, 128
    %301 = vxpose.xlu0.b32.cont [4/16] 0.0, 128
    %302 = vxpose.xlu0.b32.cont [5/16] 0.0, 128
    %303 = vxpose.xlu0.b32.cont [6/16] 0.0, 128
    %304 = vxpose.xlu0.b32.cont [7/16] 0.0, 128
    %305 = vxpose.xlu0.b32.cont [8/16] 0.0, 128
    %306 = vxpose.xlu0.b32.cont [9/16] 0.0, 128
    %307 = vxpose.xlu0.b32.cont [10/16] 0.0, 128
    %308 = vxpose.xlu0.b32.cont [11/16] 0.0, 128
    %309 = vxpose.xlu0.b32.cont [12/16] 0.0, 128
    %310 = vxpose.xlu0.b32.cont [13/16] 0.0, 128
    %311 = vxpose.xlu0.b32.cont [14/16] 0.0, 128
    %312 = vxpose.xlu0.b32.cont [15/16] 0.0, 128
    %313 = vxpose.xlu0.b32.end [16/16] 0.0, 128
    %v314 = vpop.trf.xlu0
    %v315 = vpop.trf.xlu0
    %v316 = vpop.trf.xlu0
    %v317 = vpop.trf.xlu0
    %v318 = vpop.trf.xlu0
    %v319 = vpop.trf.xlu0
    %v320 = vpop.trf.xlu0
    %v321 = vpop.trf.xlu0
    %v322 = vpop.trf.xlu0
    %v323 = vpop.trf.xlu0
    %v324 = vpop.trf.xlu0
    %v325 = vpop.trf.xlu0
    %v326 = vpop.trf.xlu0
    %v327 = vpop.trf.xlu0
    %v328 = vpop.trf.xlu0
    %v329 = vpop.trf.xlu0
    %330 = vxpose.xlu0.b32.start [1/16] %v96, 128
    %331 = vxpose.xlu0.b32.cont [2/16] 0.0, 128
    %332 = vxpose.xlu0.b32.cont [3/16] 0.0, 128
    %333 = vxpose.xlu0.b32.cont [4/16] 0.0, 128
    %334 = vxpose.xlu0.b32.cont [5/16] 0.0, 128
    %335 = vxpose.xlu0.b32.cont [6/16] 0.0, 128
    %336 = vxpose.xlu0.b32.cont [7/16] 0.0, 128
    %337 = vxpose.xlu0.b32.cont [8/16] 0.0, 128
    %338 = vxpose.xlu0.b32.cont [9/16] 0.0, 128
    %339 = vxpose.xlu0.b32.cont [10/16] 0.0, 128
    %340 = vxpose.xlu0.b32.cont [11/16] 0.0, 128
    %341 = vxpose.xlu0.b32.cont [12/16] 0.0, 128
    %342 = vxpose.xlu0.b32.cont [13/16] 0.0, 128
    %343 = vxpose.xlu0.b32.cont [14/16] 0.0, 128
    %344 = vxpose.xlu0.b32.cont [15/16] 0.0, 128
    %345 = vxpose.xlu0.b32.end [16/16] 0.0, 128
    %v346 = vpop.trf.xlu0
    %v347 = vpop.trf.xlu0
    %v348 = vpop.trf.xlu0
    %v349 = vpop.trf.xlu0
    %v350 = vpop.trf.xlu0
    %v351 = vpop.trf.xlu0
    %v352 = vpop.trf.xlu0
    %v353 = vpop.trf.xlu0
    %v354 = vpop.trf.xlu0
    %v355 = vpop.trf.xlu0
    %v356 = vpop.trf.xlu0
    %v357 = vpop.trf.xlu0
    %v358 = vpop.trf.xlu0
    %v359 = vpop.trf.xlu0
    %v360 = vpop.trf.xlu0
    %v361 = vpop.trf.xlu0
    %vm362 = vcmask 64512
    %363 = vst.msk [vmem:[#allocation2] sm:$0xff] %vm362, %v122
    %364 = vst.msk [vmem:[#allocation2 + $0x8] sm:$0xff] %vm362, %v123
    %365 = vst.msk [vmem:[#allocation2 + $0x18] sm:$0xff] %vm362, %v154
    %366 = vst.msk [vmem:[#allocation2 + $0x20] sm:$0xff] %vm362, %v155
    %367 = vst.msk [vmem:[#allocation2 + $0x30] sm:$0xff] %vm362, %v186
    %368 = vst.msk [vmem:[#allocation2 + $0x38] sm:$0xff] %vm362, %v187
    %369 = vst.msk [vmem:[#allocation2 + $0x48] sm:$0xff] %vm362, %v218
    %370 = vst.msk [vmem:[#allocation2 + $0x50] sm:$0xff] %vm362, %v219
    %371 = vst.msk [vmem:[#allocation2 + $0x60] sm:$0xff] %vm362, %v250
    %372 = vst.msk [vmem:[#allocation2 + $0x68] sm:$0xff] %vm362, %v251
    %373 = vst.msk [vmem:[#allocation2 + $0x78] sm:$0xff] %vm362, %v282
    %374 = vst.msk [vmem:[#allocation2 + $0x80] sm:$0xff] %vm362, %v283
    %375 = vst.msk [vmem:[#allocation2 + $0x90] sm:$0xff] %vm362, %v314
    %376 = vst.msk [vmem:[#allocation2 + $0x98] sm:$0xff] %vm362, %v315
    %377 = vst.msk [vmem:[#allocation2 + $0xa8] sm:$0xff] %vm362, %v346
    %378 = vst.msk [vmem:[#allocation2 + $0xb0] sm:$0xff] %vm362, %v347
    %v379 = vld [vmem:[#allocation2] ss:$2 sm:$0xff]
    %s380 = scalar_lea.vmem [#allocation2], 24
    %v381 = vld [vmem:[%s380] ss:$2 sm:$0xff]
    %s382 = scalar_lea.vmem [#allocation2], 48
    %v383 = vld [vmem:[%s382] ss:$2 sm:$0xff]
    %s384 = scalar_lea.vmem [#allocation2], 72
    %v385 = vld [vmem:[%s384] ss:$2 sm:$0xff]
    %s386 = scalar_lea.vmem [#allocation2], 96
    %v387 = vld [vmem:[%s386] ss:$2 sm:$0xff]
    %s388 = scalar_lea.vmem [#allocation2], 120
    %v389 = vld [vmem:[%s388] ss:$2 sm:$0xff]
    %s390 = scalar_lea.vmem [#allocation2], 144
    %v391 = vld [vmem:[%s390] ss:$2 sm:$0xff]
    %s392 = scalar_lea.vmem [#allocation2], 168
    %v393 = vld [vmem:[%s392] ss:$2 sm:$0xff]
    %s394 = scalar_lea.vmem [#allocation2], 1
    %v395 = vld [vmem:[%s394] ss:$2 sm:$0xff]
    %s396 = scalar_lea.vmem [#allocation2], 25
    %v397 = vld [vmem:[%s396] ss:$2 sm:$0xff]
    %s398 = scalar_lea.vmem [#allocation2], 49
    %v399 = vld [vmem:[%s398] ss:$2 sm:$0xff]
    %s400 = scalar_lea.vmem [#allocation2], 73
    %v401 = vld [vmem:[%s400] ss:$2 sm:$0xff]
    %s402 = scalar_lea.vmem [#allocation2], 97
    %v403 = vld [vmem:[%s402] ss:$2 sm:$0xff]
    %s404 = scalar_lea.vmem [#allocation2], 121
    %v405 = vld [vmem:[%s404] ss:$2 sm:$0xff]
    %s406 = scalar_lea.vmem [#allocation2], 145
    %v407 = vld [vmem:[%s406] ss:$2 sm:$0xff]
    %s408 = scalar_lea.vmem [#allocation2], 169
    %v409 = vld [vmem:[%s408] ss:$2 sm:$0xff]
    %v410 = vmax.f32 %v379, %v395
    %v411 = vmax.f32 %v381, %v397
    %v412 = vmax.f32 %v383, %v399
    %v413 = vmax.f32 %v385, %v401
    %v414 = vmax.f32 %v387, %v403
    %v415 = vmax.f32 %v389, %v405
    %v416 = vmax.f32 %v391, %v407
    %v417 = vmax.f32 %v393, %v409
    %s418 = scalar_lea.vmem [#allocation2], 2
    %v419 = vld [vmem:[%s418] ss:$2 sm:$0xff]
    %s420 = scalar_lea.vmem [#allocation2], 26
    %v421 = vld [vmem:[%s420] ss:$2 sm:$0xff]
    %s422 = scalar_lea.vmem [#allocation2], 50
    %v423 = vld [vmem:[%s422] ss:$2 sm:$0xff]
    %s424 = scalar_lea.vmem [#allocation2], 74
    %v425 = vld [vmem:[%s424] ss:$2 sm:$0xff]
    %s426 = scalar_lea.vmem [#allocation2], 98
    %v427 = vld [vmem:[%s426] ss:$2 sm:$0xff]
    %s428 = scalar_lea.vmem [#allocation2], 122
    %v429 = vld [vmem:[%s428] ss:$2 sm:$0xff]
    %s430 = scalar_lea.vmem [#allocation2], 146
    %v431 = vld [vmem:[%s430] ss:$2 sm:$0xff]
    %s432 = scalar_lea.vmem [#allocation2], 170
    %v433 = vld [vmem:[%s432] ss:$2 sm:$0xff]
    %v434 = vmax.f32 %v410, %v419
    %v435 = vmax.f32 %v411, %v421
    %v436 = vmax.f32 %v412, %v423
    %v437 = vmax.f32 %v413, %v425
    %v438 = vmax.f32 %v414, %v427
    %v439 = vmax.f32 %v415, %v429
    %v440 = vmax.f32 %v416, %v431
    %v441 = vmax.f32 %v417, %v433
    %442 = vxpose.xlu0.b32.start [1/16] %v434, 128
    %443 = vxpose.xlu0.b32.cont [2/16] 0.0, 128
    %444 = vxpose.xlu0.b32.cont [3/16] 0.0, 128
    %445 = vxpose.xlu0.b32.cont [4/16] 0.0, 128
    %446 = vxpose.xlu0.b32.cont [5/16] 0.0, 128
    %447 = vxpose.xlu0.b32.cont [6/16] 0.0, 128
    %448 = vxpose.xlu0.b32.cont [7/16] 0.0, 128
    %449 = vxpose.xlu0.b32.cont [8/16] 0.0, 128
    %450 = vxpose.xlu0.b32.cont [9/16] 0.0, 128
    %451 = vxpose.xlu0.b32.cont [10/16] 0.0, 128
    %452 = vxpose.xlu0.b32.cont [11/16] 0.0, 128
    %453 = vxpose.xlu0.b32.cont [12/16] 0.0, 128
    %454 = vxpose.xlu0.b32.cont [13/16] 0.0, 128
    %455 = vxpose.xlu0.b32.cont [14/16] 0.0, 128
    %456 = vxpose.xlu0.b32.cont [15/16] 0.0, 128
    %457 = vxpose.xlu0.b32.end [16/16] 0.0, 128
    %v458 = vpop.trf.xlu0
    %v459 = vpop.trf.xlu0
    %v460 = vpop.trf.xlu0
    %v461 = vpop.trf.xlu0
    %v462 = vpop.trf.xlu0
    %v463 = vpop.trf.xlu0
    %v464 = vpop.trf.xlu0
    %v465 = vpop.trf.xlu0
    %v466 = vpop.trf.xlu0
    %v467 = vpop.trf.xlu0
    %v468 = vpop.trf.xlu0
    %v469 = vpop.trf.xlu0
    %v470 = vpop.trf.xlu0
    %v471 = vpop.trf.xlu0
    %v472 = vpop.trf.xlu0
    %v473 = vpop.trf.xlu0
    %474 = vxpose.xlu0.b32.start [1/16] %v435, 128
    %475 = vxpose.xlu0.b32.cont [2/16] 0.0, 128
    %476 = vxpose.xlu0.b32.cont [3/16] 0.0, 128
    %477 = vxpose.xlu0.b32.cont [4/16] 0.0, 128
    %478 = vxpose.xlu0.b32.cont [5/16] 0.0, 128
    %479 = vxpose.xlu0.b32.cont [6/16] 0.0, 128
    %480 = vxpose.xlu0.b32.cont [7/16] 0.0, 128
    %481 = vxpose.xlu0.b32.cont [8/16] 0.0, 128
    %482 = vxpose.xlu0.b32.cont [9/16] 0.0, 128
    %483 = vxpose.xlu0.b32.cont [10/16] 0.0, 128
    %484 = vxpose.xlu0.b32.cont [11/16] 0.0, 128
    %485 = vxpose.xlu0.b32.cont [12/16] 0.0, 128
    %486 = vxpose.xlu0.b32.cont [13/16] 0.0, 128
    %487 = vxpose.xlu0.b32.cont [14/16] 0.0, 128
    %488 = vxpose.xlu0.b32.cont [15/16] 0.0, 128
    %489 = vxpose.xlu0.b32.end [16/16] 0.0, 128
    %v490 = vpop.trf.xlu0
    %v491 = vpop.trf.xlu0
    %v492 = vpop.trf.xlu0
    %v493 = vpop.trf.xlu0
    %v494 = vpop.trf.xlu0
    %v495 = vpop.trf.xlu0
    %v496 = vpop.trf.xlu0
    %v497 = vpop.trf.xlu0
    %v498 = vpop.trf.xlu0
    %v499 = vpop.trf.xlu0
    %v500 = vpop.trf.xlu0
    %v501 = vpop.trf.xlu0
    %v502 = vpop.trf.xlu0
    %v503 = vpop.trf.xlu0
    %v504 = vpop.trf.xlu0
    %v505 = vpop.trf.xlu0
    %506 = vxpose.xlu0.b32.start [1/16] %v436, 128
    %507 = vxpose.xlu0.b32.cont [2/16] 0.0, 128
    %508 = vxpose.xlu0.b32.cont [3/16] 0.0, 128
    %509 = vxpose.xlu0.b32.cont [4/16] 0.0, 128
    %510 = vxpose.xlu0.b32.cont [5/16] 0.0, 128
    %511 = vxpose.xlu0.b32.cont [6/16] 0.0, 128
    %512 = vxpose.xlu0.b32.cont [7/16] 0.0, 128
    %513 = vxpose.xlu0.b32.cont [8/16] 0.0, 128
    %514 = vxpose.xlu0.b32.cont [9/16] 0.0, 128
    %515 = vxpose.xlu0.b32.cont [10/16] 0.0, 128
    %516 = vxpose.xlu0.b32.cont [11/16] 0.0, 128
    %517 = vxpose.xlu0.b32.cont [12/16] 0.0, 128
    %518 = vxpose.xlu0.b32.cont [13/16] 0.0, 128
    %519 = vxpose.xlu0.b32.cont [14/16] 0.0, 128
    %520 = vxpose.xlu0.b32.cont [15/16] 0.0, 128
    %521 = vxpose.xlu0.b32.end [16/16] 0.0, 128
    %v522 = vpop.trf.xlu0
    %v523 = vpop.trf.xlu0
    %v524 = vpop.trf.xlu0
    %v525 = vpop.trf.xlu0
    %v526 = vpop.trf.xlu0
    %v527 = vpop.trf.xlu0
    %v528 = vpop.trf.xlu0
    %v529 = vpop.trf.xlu0
    %v530 = vpop.trf.xlu0
    %v531 = vpop.trf.xlu0
    %v532 = vpop.trf.xlu0
    %v533 = vpop.trf.xlu0
    %v534 = vpop.trf.xlu0
    %v535 = vpop.trf.xlu0
    %v536 = vpop.trf.xlu0
    %v537 = vpop.trf.xlu0
    %538 = vxpose.xlu0.b32.start [1/16] %v437, 128
    %539 = vxpose.xlu0.b32.cont [2/16] 0.0, 128
    %540 = vxpose.xlu0.b32.cont [3/16] 0.0, 128
    %541 = vxpose.xlu0.b32.cont [4/16] 0.0, 128
    %542 = vxpose.xlu0.b32.cont [5/16] 0.0, 128
    %543 = vxpose.xlu0.b32.cont [6/16] 0.0, 128
    %544 = vxpose.xlu0.b32.cont [7/16] 0.0, 128
    %545 = vxpose.xlu0.b32.cont [8/16] 0.0, 128
    %546 = vxpose.xlu0.b32.cont [9/16] 0.0, 128
    %547 = vxpose.xlu0.b32.cont [10/16] 0.0, 128
    %548 = vxpose.xlu0.b32.cont [11/16] 0.0, 128
    %549 = vxpose.xlu0.b32.cont [12/16] 0.0, 128
    %550 = vxpose.xlu0.b32.cont [13/16] 0.0, 128
    %551 = vxpose.xlu0.b32.cont [14/16] 0.0, 128
    %552 = vxpose.xlu0.b32.cont [15/16] 0.0, 128
    %553 = vxpose.xlu0.b32.end [16/16] 0.0, 128
    %v554 = vpop.trf.xlu0
    %v555 = vpop.trf.xlu0
    %v556 = vpop.trf.xlu0
    %v557 = vpop.trf.xlu0
    %v558 = vpop.trf.xlu0
    %v559 = vpop.trf.xlu0
    %v560 = vpop.trf.xlu0
    %v561 = vpop.trf.xlu0
    %v562 = vpop.trf.xlu0
    %v563 = vpop.trf.xlu0
    %v564 = vpop.trf.xlu0
    %v565 = vpop.trf.xlu0
    %v566 = vpop.trf.xlu0
    %v567 = vpop.trf.xlu0
    %v568 = vpop.trf.xlu0
    %v569 = vpop.trf.xlu0
    %570 = vxpose.xlu0.b32.start [1/16] %v438, 128
    %571 = vxpose.xlu0.b32.cont [2/16] 0.0, 128
    %572 = vxpose.xlu0.b32.cont [3/16] 0.0, 128
    %573 = vxpose.xlu0.b32.cont [4/16] 0.0, 128
    %574 = vxpose.xlu0.b32.cont [5/16] 0.0, 128
    %575 = vxpose.xlu0.b32.cont [6/16] 0.0, 128
    %576 = vxpose.xlu0.b32.cont [7/16] 0.0, 128
    %577 = vxpose.xlu0.b32.cont [8/16] 0.0, 128
    %578 = vxpose.xlu0.b32.cont [9/16] 0.0, 128
    %579 = vxpose.xlu0.b32.cont [10/16] 0.0, 128
    %580 = vxpose.xlu0.b32.cont [11/16] 0.0, 128
    %581 = vxpose.xlu0.b32.cont [12/16] 0.0, 128
    %582 = vxpose.xlu0.b32.cont [13/16] 0.0, 128
    %583 = vxpose.xlu0.b32.cont [14/16] 0.0, 128
    %584 = vxpose.xlu0.b32.cont [15/16] 0.0, 128
    %585 = vxpose.xlu0.b32.end [16/16] 0.0, 128
    %v586 = vpop.trf.xlu0
    %v587 = vpop.trf.xlu0
    %v588 = vpop.trf.xlu0
    %v589 = vpop.trf.xlu0
    %v590 = vpop.trf.xlu0
    %v591 = vpop.trf.xlu0
    %v592 = vpop.trf.xlu0
    %v593 = vpop.trf.xlu0
    %v594 = vpop.trf.xlu0
    %v595 = vpop.trf.xlu0
    %v596 = vpop.trf.xlu0
    %v597 = vpop.trf.xlu0
    %v598 = vpop.trf.xlu0
    %v599 = vpop.trf.xlu0
    %v600 = vpop.trf.xlu0
    %v601 = vpop.trf.xlu0
    %602 = vxpose.xlu0.b32.start [1/16] %v439, 128
    %603 = vxpose.xlu0.b32.cont [2/16] 0.0, 128
    %604 = vxpose.xlu0.b32.cont [3/16] 0.0, 128
    %605 = vxpose.xlu0.b32.cont [4/16] 0.0, 128
    %606 = vxpose.xlu0.b32.cont [5/16] 0.0, 128
    %607 = vxpose.xlu0.b32.cont [6/16] 0.0, 128
    %608 = vxpose.xlu0.b32.cont [7/16] 0.0, 128
    %609 = vxpose.xlu0.b32.cont [8/16] 0.0, 128
    %610 = vxpose.xlu0.b32.cont [9/16] 0.0, 128
    %611 = vxpose.xlu0.b32.cont [10/16] 0.0, 128
    %612 = vxpose.xlu0.b32.cont [11/16] 0.0, 128
    %613 = vxpose.xlu0.b32.cont [12/16] 0.0, 128
    %614 = vxpose.xlu0.b32.cont [13/16] 0.0, 128
    %615 = vxpose.xlu0.b32.cont [14/16] 0.0, 128
    %616 = vxpose.xlu0.b32.cont [15/16] 0.0, 128
    %617 = vxpose.xlu0.b32.end [16/16] 0.0, 128
    %v618 = vpop.trf.xlu0
    %v619 = vpop.trf.xlu0
    %v620 = vpop.trf.xlu0
    %v621 = vpop.trf.xlu0
    %v622 = vpop.trf.xlu0
    %v623 = vpop.trf.xlu0
    %v624 = vpop.trf.xlu0
    %v625 = vpop.trf.xlu0
    %v626 = vpop.trf.xlu0
    %v627 = vpop.trf.xlu0
    %v628 = vpop.trf.xlu0
    %v629 = vpop.trf.xlu0
    %v630 = vpop.trf.xlu0
    %v631 = vpop.trf.xlu0
    %v632 = vpop.trf.xlu0
    %v633 = vpop.trf.xlu0
    %634 = vxpose.xlu0.b32.start [1/16] %v440, 128
    %635 = vxpose.xlu0.b32.cont [2/16] 0.0, 128
    %636 = vxpose.xlu0.b32.cont [3/16] 0.0, 128
    %637 = vxpose.xlu0.b32.cont [4/16] 0.0, 128
    %638 = vxpose.xlu0.b32.cont [5/16] 0.0, 128
    %639 = vxpose.xlu0.b32.cont [6/16] 0.0, 128
    %640 = vxpose.xlu0.b32.cont [7/16] 0.0, 128
    %641 = vxpose.xlu0.b32.cont [8/16] 0.0, 128
    %642 = vxpose.xlu0.b32.cont [9/16] 0.0, 128
    %643 = vxpose.xlu0.b32.cont [10/16] 0.0, 128
    %644 = vxpose.xlu0.b32.cont [11/16] 0.0, 128
    %645 = vxpose.xlu0.b32.cont [12/16] 0.0, 128
    %646 = vxpose.xlu0.b32.cont [13/16] 0.0, 128
    %647 = vxpose.xlu0.b32.cont [14/16] 0.0, 128
    %648 = vxpose.xlu0.b32.cont [15/16] 0.0, 128
    %649 = vxpose.xlu0.b32.end [16/16] 0.0, 128
    %v650 = vpop.trf.xlu0
    %v651 = vpop.trf.xlu0
    %v652 = vpop.trf.xlu0
    %v653 = vpop.trf.xlu0
    %v654 = vpop.trf.xlu0
    %v655 = vpop.trf.xlu0
    %v656 = vpop.trf.xlu0
    %v657 = vpop.trf.xlu0
    %v658 = vpop.trf.xlu0
    %v659 = vpop.trf.xlu0
    %v660 = vpop.trf.xlu0
    %v661 = vpop.trf.xlu0
    %v662 = vpop.trf.xlu0
    %v663 = vpop.trf.xlu0
    %v664 = vpop.trf.xlu0
    %v665 = vpop.trf.xlu0
    %666 = vxpose.xlu0.b32.start [1/16] %v441, 128
    %667 = vxpose.xlu0.b32.cont [2/16] 0.0, 128
    %668 = vxpose.xlu0.b32.cont [3/16] 0.0, 128
    %669 = vxpose.xlu0.b32.cont [4/16] 0.0, 128
    %670 = vxpose.xlu0.b32.cont [5/16] 0.0, 128
    %671 = vxpose.xlu0.b32.cont [6/16] 0.0, 128
    %672 = vxpose.xlu0.b32.cont [7/16] 0.0, 128
    %673 = vxpose.xlu0.b32.cont [8/16] 0.0, 128
    %674 = vxpose.xlu0.b32.cont [9/16] 0.0, 128
    %675 = vxpose.xlu0.b32.cont [10/16] 0.0, 128
    %676 = vxpose.xlu0.b32.cont [11/16] 0.0, 128
    %677 = vxpose.xlu0.b32.cont [12/16] 0.0, 128
    %678 = vxpose.xlu0.b32.cont [13/16] 0.0, 128
    %679 = vxpose.xlu0.b32.cont [14/16] 0.0, 128
    %680 = vxpose.xlu0.b32.cont [15/16] 0.0, 128
    %681 = vxpose.xlu0.b32.end [16/16] 0.0, 128
    %v682 = vpop.trf.xlu0
    %v683 = vpop.trf.xlu0
    %v684 = vpop.trf.xlu0
    %v685 = vpop.trf.xlu0
    %v686 = vpop.trf.xlu0
    %v687 = vpop.trf.xlu0
    %v688 = vpop.trf.xlu0
    %v689 = vpop.trf.xlu0
    %v690 = vpop.trf.xlu0
    %v691 = vpop.trf.xlu0
    %v692 = vpop.trf.xlu0
    %v693 = vpop.trf.xlu0
    %v694 = vpop.trf.xlu0
    %v695 = vpop.trf.xlu0
    %v696 = vpop.trf.xlu0
    %v697 = vpop.trf.xlu0
    %698 = vst.msk [vmem:[#allocation6] sm:$0xff] %vm362, %v458
    %699 = vst.msk [vmem:[#allocation6 + $0x8] sm:$0xff] %vm362, %v490
    %700 = vst.msk [vmem:[#allocation6 + $0x10] sm:$0xff] %vm362, %v522
    %701 = vst.msk [vmem:[#allocation6 + $0x18] sm:$0xff] %vm362, %v554
    %702 = vst.msk [vmem:[#allocation6 + $0x20] sm:$0xff] %vm362, %v586
    %703 = vst.msk [vmem:[#allocation6 + $0x28] sm:$0xff] %vm362, %v618
    %704 = vst.msk [vmem:[#allocation6 + $0x30] sm:$0xff] %vm362, %v650
    %705 = vst.msk [vmem:[#allocation6 + $0x38] sm:$0xff] %vm362, %v682
    // Predicated region
    $region10: #{tpu_custom_call.1} parent=1 // pred_check
      _
    $region11: #{tpu_custom_call.1} parent=1 // pred_check_branch
      %707 = sbr.rel (0) target = $region13
    $region12: #{tpu_custom_call.1} parent=1 // pred_region
      %709 = vsyncadd [#allocation5], 0
      %s710 = sshll.u32 [#allocation6], 4
      %s711 = int_to_ptr.vmem [resolvable:$true] %s710
      %s712 = sshll.u32 %s1, 4
      %s713 = int_to_ptr.hbm [resolvable:$true] %s712
      %718 = dma.vmem_to_hbm [thread:$0]  %s711, 1024, %s713, [#allocation5], 128, 128, 8
    $region13: #{tpu_custom_call.1} parent=1 // pred_fallthru
      _
    // Predicated region
    $region14: #{tpu_custom_call.1} parent=1 // pred_check
      _
    $region15: #{tpu_custom_call.1} parent=1 // pred_check_branch
      %720 = sbr.rel (0) target = $region17
    $region16: #{tpu_custom_call.1} parent=1 // pred_region
      %722 = dma.done [#allocation5], 1024
    $region17: #{tpu_custom_call.1} parent=1 // pred_fallthru
      _
    %723 = vsyncpa [#allocation4], 1
    %724 = vsyncpa [#allocation5], 1

</llo_original>
